<compile_context>
chip_gen: v5e
topology: v5e:2x2
jax: 0.10.0
libtpu: 0.0.40
codegen_flags: <defaults>
</compile_context>

<pallas_src>
import jax
import jax.numpy as jnp
from jax import lax
from jax.experimental import pallas as pl
from jax.experimental.pallas import tpu as pltpu

LANE = 128


def _round_up(n, m):
    return -(-n // m) * m


def _num_tensorcores():
    try:
        return max(1, int(getattr(jax.devices()[0], "num_cores", 1)))
    except Exception:
        return 1


def _vmem_limit_bytes(bt, Tc, I, Hp, Op, x_itemsize):
    pad8 = lambda n: _round_up(max(n, 1), 8)
    lane = lambda n: _round_up(max(n, 1), LANE)
    x_block = pad8(bt) * Tc * lane(I) * x_itemsize
    w_block = (pad8(I) * Hp * x_itemsize + Hp * Hp * 4 + Hp * Op * 4
               + 8 * Hp * 4 + 8 * Op * 4)
    out_block = pad8(bt) * Op * 4
    scr = pad8(bt) * Hp * 4 + 2 * pad8(bt) * Tc * Hp * 4
    est = 2 * x_block + 2 * w_block + 2 * out_block + scr      # 2x = double buffers
    est = int(est * 1.5) + (4 << 20)                           # compiler headroom
    try:
        cap = int(pltpu.get_tpu_info().vmem_capacity_bytes)
    except Exception:
        cap = 128 << 20
    cap = (cap * 5) // 8          # ~40 MiB cap on v7x (64 MiB/TC), ~80 MiB on v5e/v6e
    return max(16 << 20, min(est, cap))


def _make_rnn_kernel(*, hidden_size, time_chunk, seq_len, has_pad):
    H, Tc, T = hidden_size, time_chunk, seq_len

    def kernel(x_ref, w_ih_ref, w_hh_ref, b_ref, w_fc_ref, b_fc_ref,
               out_ref, h_ref, pre_ref):
        # x_ref:    (bt, Tc, I)       batch-first time chunk (chunk index = t, clamped)
        # w_ih_ref: (I, Hp)           W_ih^T, zero-padded to Hp lanes
        # w_hh_ref: (Hp, Hp)          W_hh^T, zero-padded
        # b_ref:    (1, Hp)           b_ih + b_hh, zero-padded
        # w_fc_ref: (Hp, Op)          W_fc^T, zero-padded
        # b_fc_ref: (1, Op)
        # out_ref:  (bt, Op)          lane-dense output (sliced back to O in wrapper)
        # h_ref:    (bt, Hp)          VMEM scratch: hidden state carried across chunks
        # pre_ref:  (2, bt, Tc, Hp)   VMEM scratch: staged pre-activations (2 slots)
        t = pl.program_id(1)
        n_t = pl.num_programs(1)
        slot = lax.rem(t, 2)

        bt = x_ref.shape[0]
        in_dim = x_ref.shape[2]
        Hp = w_ih_ref.shape[1]

        @pl.when(t == 0)
        def _init():
            h_ref[...] = jnp.zeros_like(h_ref)

        # ---- Stage A: serial recurrence over the chunk staged LAST grid step.
        # Emitted before the projection so its pre_ref loads are not ordered
        # after the projection's pre_ref store (different slot, no real hazard).
        @pl.when(t > 0)
        def _recur():
            prev = 1 - slot
            chunk = t - 1
            h = h_ref[...]

            if H == 1:
                # Default config: per-step h @ W_hh^T is a single VPU multiply.
                w_row = w_hh_ref[0:1, :]                     # only [0, 0] nonzero

                def hh(hv):
                    return hv * w_row
            elif H <= 8:
                # Small H: broadcast-multiply-accumulate on the VPU, no MXU.
                w_rows = w_hh_ref[0:H, :]

                def hh(hv):
                    acc = hv[:, 0:1] * w_rows[0:1, :]
                    for i in range(1, H):
                        acc = acc + hv[:, i:i + 1] * w_rows[i:i + 1, :]
                    return acc
            else:
                # TODO(synk): for large H, pin W_hh in MXU weight registers
                # (pltpu.matmul_push_rhs) once per chunk instead of re-streaming.
                w_full = w_hh_ref[...]

                def hh(hv):
                    return jnp.dot(hv, w_full, preferred_element_type=jnp.float32)

            # Fully unrolled (Tc static); per-step pre is re-loaded from VMEM
            # scratch so nothing large stays live across the unrolled chain.
            for tt in range(Tc):
                pre_t = pre_ref[prev, :, tt, :]              # (bt, Hp), lane-dense
                h_new = jnp.tanh(pre_t + hh(h))
                if has_pad:
                    # Padded tail timesteps carry h unchanged.
                    valid = (chunk * Tc + tt) < T
                    h = jnp.where(valid, h_new, h)
                else:
                    h = h_new
            h_ref[...] = h

            # ---- Stage C: Linear head on the final hidden state (drain step).
            @pl.when(t == n_t - 1)
            def _finalize():
                out_ref[...] = (
                    jnp.dot(h, w_fc_ref[...], preferred_element_type=jnp.float32)
                    + b_fc_ref[...]
                ).astype(out_ref.dtype)

        # ---- Stage B: hoisted input projection for chunk t (one chunk ahead).
        @pl.when(t < n_t - 1)
        def _project():
            x_flat = x_ref[...].reshape(bt * Tc, in_dim)
            pre = (
                jnp.dot(x_flat, w_ih_ref[...], preferred_element_type=jnp.float32)
                + b_ref[...]
            )
            pre_ref[slot] = pre.reshape(bt, Tc, Hp)

    return kernel


def simple_rnn_forward(x, params, *, projection_dtype=jnp.float32,
                       max_time_chunk=128):
    """x: (B, T, I) float32, batch-first.  Returns (B, O) float32.

    projection_dtype=jnp.bfloat16 halves the x HBM->VMEM bytes and doubles MXU
    throughput for the hoisted input projection on v6e/v7x (f32 accumulation
    and an f32 recurrence are kept); the f32 default preserves tight parity
    with the reference.
    """
    w_ih, w_hh, b_ih, b_hh, w_fc, b_fc = (
        params["w_ih"], params["w_hh"], params["b_ih"],
        params["b_hh"], params["w_fc"], params["b_fc"],
    )
    B, T, I = x.shape
    H = w_ih.shape[0]
    O = w_fc.shape[0]
    Hp = _round_up(H, LANE)
    Op = _round_up(O, LANE)

    # Bounded time chunk (multiple of 8); pad T up to a multiple of Tc and mask.
    max_time_chunk = max(8, (max_time_chunk // 8) * 8)
    Tc = min(_round_up(T, 8), max_time_chunk)
    T_pad = _round_up(T, Tc)
    n_chunks = T_pad // Tc
    has_pad = (T_pad != T)

    # Optional batch-parallel axis (v7x: 2 TensorCores/chip).  No-op for small B.
    n_cores = _num_tensorcores()
    n_bt = n_cores if (n_cores > 1 and B % (8 * n_cores) == 0) else 1
    bt = B // n_bt

    # Parameter layout prep (tiny tensors): transpose + zero-pad H / O up to 128
    # lanes so every matmul N-dim and the output store are lane-dense.  The zero
    # padding keeps padded hidden lanes exactly 0 through the recurrence
    # (tanh(0) = 0), so the real lanes match the unpadded math bit-for-bit.
    w_ih_t = jnp.zeros((I, Hp), projection_dtype).at[:, :H].set(
        w_ih.T.astype(projection_dtype))
    w_hh_t = jnp.zeros((Hp, Hp), jnp.float32).at[:H, :H].set(w_hh.T)
    b_comb = jnp.zeros((1, Hp), jnp.float32).at[0, :H].set(b_ih + b_hh)
    w_fc_t = jnp.zeros((Hp, Op), jnp.float32).at[:H, :O].set(w_fc.T)
    b_fc_p = jnp.zeros((1, Op), jnp.float32).at[0, :O].set(b_fc)

    x_in = x.astype(projection_dtype)            # batch-first; no wrapper transpose
    if has_pad:
        x_in = jnp.pad(x_in, ((0, 0), (0, T_pad - T), (0, 0)))

    kernel = _make_rnn_kernel(hidden_size=H, time_chunk=Tc, seq_len=T,
                              has_pad=has_pad)

    last_chunk = n_chunks - 1
    grid = (n_bt, n_chunks + 1)                  # +1 drain step for the pipeline

    out_padded = pl.pallas_call(
        kernel,
        out_shape=jax.ShapeDtypeStruct((B, Op), jnp.float32),
        grid=grid,
        in_specs=[
            # x chunks; the drain step re-presents the last chunk (clamped index).
            pl.BlockSpec((bt, Tc, I),
                         lambda b, t: (b, jnp.minimum(t, last_chunk), 0)),
            pl.BlockSpec((I, Hp), lambda b, t: (0, 0)),
            pl.BlockSpec((Hp, Hp), lambda b, t: (0, 0)),
            pl.BlockSpec((1, Hp), lambda b, t: (0, 0)),
            pl.BlockSpec((Hp, Op), lambda b, t: (0, 0)),
            pl.BlockSpec((1, Op), lambda b, t: (0, 0)),
        ],
        out_specs=pl.BlockSpec((bt, Op), lambda b, t: (b, 0)),
        scratch_shapes=[
            pltpu.VMEM((bt, Hp), jnp.float32),          # carried hidden state
            pltpu.VMEM((2, bt, Tc, Hp), jnp.float32),   # staged pre-activations
        ],
        compiler_params=pltpu.CompilerParams(
            dimension_semantics=("parallel", "arbitrary"),
            vmem_limit_bytes=_vmem_limit_bytes(
                bt, Tc, I, Hp, Op, jnp.dtype(projection_dtype).itemsize),
        ),
    )(x_in, w_ih_t, w_hh_t, b_comb, w_fc_t, b_fc_p)

    return out_padded[:, :O]


def init_params(key, input_size=273, hidden_size=1, output_size=1):
    """Deterministic init mimicking PyTorch's uniform(-1/sqrt(H), 1/sqrt(H))."""
    k = 1.0 / jnp.sqrt(jnp.float32(hidden_size))
    keys = jax.random.split(key, 6)
    u = lambda kk, shape: jax.random.uniform(kk, shape, jnp.float32,
                                             minval=-k, maxval=k)
    return {
        "w_ih": u(keys[0], (hidden_size, input_size)),
        "w_hh": u(keys[1], (hidden_size, hidden_size)),
        "b_ih": u(keys[2], (hidden_size,)),
        "b_hh": u(keys[3], (hidden_size,)),
        "w_fc": u(keys[4], (output_size, hidden_size)),
        "b_fc": u(keys[5], (output_size,)),
    }


def _reference_forward(x, params):
    """Pure-JAX reference.  Written with explicit multiply+sum (no dot_general)
    so it stays full-f32 on TPU regardless of the default matmul precision."""
    w_ih, w_hh, b_ih, b_hh, w_fc, b_fc = (
        params["w_ih"], params["w_hh"], params["b_ih"],
        params["b_hh"], params["w_fc"], params["b_fc"],
    )
    B, T, _ = x.shape
    H = w_ih.shape[0]
    h = jnp.zeros((B, H), jnp.float32)
    for t in range(T):
        proj = jnp.sum(x[:, t, None, :] * w_ih[None, :, :], axis=-1)   # x_t @ W_ih^T
        rec = jnp.sum(h[:, None, :] * w_hh[None, :, :], axis=-1)       # h   @ W_hh^T
        h = jnp.tanh(proj + rec + b_ih + b_hh)
    return jnp.sum(h[:, None, :] * w_fc[None, :, :], axis=-1) + b_fc   # h_T @ W_fc^T


if __name__ == "__main__":
    key = jax.random.PRNGKey(0)
    kx1, kx2, kp = jax.random.split(key, 3)

    # Module defaults: input_size=273, hidden_size=1, output_size=1.
    B, T, I, H, O = 2, 8, 273, 1, 1
    params = init_params(kp, input_size=I, hidden_size=H, output_size=O)

    # Tolerance note: the kernel's input projection runs on the MXU, whose f32
    # pass decomposition can differ slightly from the elementwise-f32 reference;
    # structural bugs (wrong chunk order / masking / hidden-state carry) would
    # show up as O(1) errors, far above this tolerance.
    TOL = dict(atol=1e-2, rtol=1e-2)

    x1 = jax.random.normal(kx1, (B, T, I), jnp.float32)
    out1 = jax.block_until_ready(simple_rnn_forward(x1, params))
    ref1 = _reference_forward(x1, params)
    assert out1.shape == (B, O)
    assert jnp.allclose(out1, ref1, **TOL), (out1, ref1)

    # Awkward sequence length: exercises T-padding + masked tail timesteps and
    # the multi-chunk software pipeline (3 chunks + drain step, slot ping-pong).
    T2 = 37
    x2 = jax.random.normal(kx2, (B, T2, I), jnp.float32)
    out2 = jax.block_until_ready(
        simple_rnn_forward(x2, params, max_time_chunk=16))
    ref2 = _reference_forward(x2, params)
    assert out2.shape == (B, O)
    assert jnp.allclose(out2, ref2, **TOL), (out2, ref2)

    print("KERNEL_OK")
</pallas_src>

<mosaic_0001>
module attributes {stable_mosaic.version = 11 : i64} {
  func.func @kernel(%arg0: i32, %arg1: i32, %arg2: memref<2x8x273xf32, #tpu.memory_space<vmem>>, %arg3: memref<273x128xf32, #tpu.memory_space<vmem>>, %arg4: memref<128x128xf32, #tpu.memory_space<vmem>>, %arg5: memref<1x128xf32, #tpu.memory_space<vmem>>, %arg6: memref<128x128xf32, #tpu.memory_space<vmem>>, %arg7: memref<1x128xf32, #tpu.memory_space<vmem>>, %arg8: memref<2x128xf32, #tpu.memory_space<vmem>>, %arg9: memref<2x128xf32, #tpu.memory_space<vmem>>, %arg10: memref<2x2x8x128xf32, #tpu.memory_space<vmem>>) attributes {dimension_semantics = [#tpu.dimension_semantics<parallel>, #tpu.dimension_semantics<arbitrary>], iteration_bounds = array<i64: 1, 2>, scalar_prefetch = 0 : i64, scratch_operands = 2 : i64, tpu.core_type = #tpu.core_type<tc>, window_params = [{transform_indices = @transform_0, window_bounds = array<i64: 2, 8, 273>}, {pipeline_mode = #tpu.pipeline_mode<synchronous>, transform_indices = @transform_1, window_bounds = array<i64: 273, 128>}, {pipeline_mode = #tpu.pipeline_mode<synchronous>, transform_indices = @transform_2, window_bounds = array<i64: 128, 128>}, {pipeline_mode = #tpu.pipeline_mode<synchronous>, transform_indices = @transform_3, window_bounds = array<i64: 1, 128>}, {pipeline_mode = #tpu.pipeline_mode<synchronous>, transform_indices = @transform_4, window_bounds = array<i64: 128, 128>}, {pipeline_mode = #tpu.pipeline_mode<synchronous>, transform_indices = @transform_5, window_bounds = array<i64: 1, 128>}, {transform_indices = @transform_6, window_bounds = array<i64: 2, 128>}]} {
    %c2_i32 = arith.constant 2 : i32
    %0 = arith.remsi %arg1, %c2_i32 : i32
    %c0_i32 = arith.constant 0 : i32
    %1 = arith.cmpi eq, %arg1, %c0_i32 : i32
    %2 = arith.extui %1 : i1 to i32
    %c0_i32_0 = arith.constant 0 : i32
    %3 = arith.cmpi ne, %2, %c0_i32_0 : i32
    scf.if %3 {
      %cst = arith.constant 0.000000e+00 : f32
      %10 = vector.broadcast %cst : f32 to vector<2x128xf32>
      %c0 = arith.constant 0 : index
      %c0_4 = arith.constant 0 : index
      %11 = vector.load %arg9[%c0, %c0_4] : memref<2x128xf32, #tpu.memory_space<vmem>>, vector<2x128xf32>
      tpu.vector_store %arg9[%c0, %c0_4], %10 {strides = array<i32>} : memref<2x128xf32, #tpu.memory_space<vmem>>, vector<2x128xf32>,
    } else {
    }
    %c0_i32_1 = arith.constant 0 : i32
    %4 = arith.cmpi sgt, %arg1, %c0_i32_1 : i32
    %5 = arith.extui %4 : i1 to i32
    %c0_i32_2 = arith.constant 0 : i32
    %6 = arith.cmpi ne, %5, %c0_i32_2 : i32
    scf.if %6 {
      %c1_i32_4 = arith.constant 1 : i32
      %10 = arith.subi %c1_i32_4, %0 : i32
      %c0 = arith.constant 0 : index
      %c0_5 = arith.constant 0 : index
      %11 = vector.load %arg9[%c0, %c0_5] : memref<2x128xf32, #tpu.memory_space<vmem>>, vector<2x128xf32>
      %c0_6 = arith.constant 0 : index
      %c0_7 = arith.constant 0 : index
      %12 = vector.load %arg4[%c0_6, %c0_7] : memref<128x128xf32, #tpu.memory_space<vmem>>, vector<1x128xf32>
      %13 = arith.index_cast %10 : i32 to index
      %c0_8 = arith.constant 0 : index
      %c0_9 = arith.constant 0 : index
      %c0_10 = arith.constant 0 : index
      %14 = vector.load %arg10[%13, %c0_8, %c0_9, %c0_10] : memref<2x2x8x128xf32, #tpu.memory_space<vmem>>, vector<1x2x1x128xf32>
      %15 = vector.shape_cast %14 : vector<1x2x1x128xf32> to vector<2x128xf32>
      %16 = vector.broadcast %12 : vector<1x128xf32> to vector<2x128xf32>
      %17 = arith.mulf %11, %16 : vector<2x128xf32>
      %18 = arith.addf %15, %17 : vector<2x128xf32>
      %19 = math.tanh %18 : vector<2x128xf32>
      %20 = arith.index_cast %10 : i32 to index
      %c0_11 = arith.constant 0 : index
      %c1 = arith.constant 1 : index
      %c0_12 = arith.constant 0 : index
      %21 = vector.load %arg10[%20, %c0_11, %c1, %c0_12] : memref<2x2x8x128xf32, #tpu.memory_space<vmem>>, vector<1x2x1x128xf32>
      %22 = vector.shape_cast %21 : vector<1x2x1x128xf32> to vector<2x128xf32>
      %23 = vector.broadcast %12 : vector<1x128xf32> to vector<2x128xf32>
      %24 = arith.mulf %19, %23 : vector<2x128xf32>
      %25 = arith.addf %22, %24 : vector<2x128xf32>
      %26 = math.tanh %25 : vector<2x128xf32>
      %27 = arith.index_cast %10 : i32 to index
      %c0_13 = arith.constant 0 : index
      %c2 = arith.constant 2 : index
      %c0_14 = arith.constant 0 : index
      %28 = vector.load %arg10[%27, %c0_13, %c2, %c0_14] : memref<2x2x8x128xf32, #tpu.memory_space<vmem>>, vector<1x2x1x128xf32>
      %29 = vector.shape_cast %28 : vector<1x2x1x128xf32> to vector<2x128xf32>
      %30 = vector.broadcast %12 : vector<1x128xf32> to vector<2x128xf32>
      %31 = arith.mulf %26, %30 : vector<2x128xf32>
      %32 = arith.addf %29, %31 : vector<2x128xf32>
      %33 = math.tanh %32 : vector<2x128xf32>
      %34 = arith.index_cast %10 : i32 to index
      %c0_15 = arith.constant 0 : index
      %c3 = arith.constant 3 : index
      %c0_16 = arith.constant 0 : index
      %35 = vector.load %arg10[%34, %c0_15, %c3, %c0_16] : memref<2x2x8x128xf32, #tpu.memory_space<vmem>>, vector<1x2x1x128xf32>
      %36 = vector.shape_cast %35 : vector<1x2x1x128xf32> to vector<2x128xf32>
      %37 = vector.broadcast %12 : vector<1x128xf32> to vector<2x128xf32>
      %38 = arith.mulf %33, %37 : vector<2x128xf32>
      %39 = arith.addf %36, %38 : vector<2x128xf32>
      %40 = math.tanh %39 : vector<2x128xf32>
      %41 = arith.index_cast %10 : i32 to index
      %c0_17 = arith.constant 0 : index
      %c4 = arith.constant 4 : index
      %c0_18 = arith.constant 0 : index
      %42 = vector.load %arg10[%41, %c0_17, %c4, %c0_18] : memref<2x2x8x128xf32, #tpu.memory_space<vmem>>, vector<1x2x1x128xf32>
      %43 = vector.shape_cast %42 : vector<1x2x1x128xf32> to vector<2x128xf32>
      %44 = vector.broadcast %12 : vector<1x128xf32> to vector<2x128xf32>
      %45 = arith.mulf %40, %44 : vector<2x128xf32>
      %46 = arith.addf %43, %45 : vector<2x128xf32>
      %47 = math.tanh %46 : vector<2x128xf32>
      %48 = arith.index_cast %10 : i32 to index
      %c0_19 = arith.constant 0 : index
      %c5 = arith.constant 5 : index
      %c0_20 = arith.constant 0 : index
      %49 = vector.load %arg10[%48, %c0_19, %c5, %c0_20] : memref<2x2x8x128xf32, #tpu.memory_space<vmem>>, vector<1x2x1x128xf32>
      %50 = vector.shape_cast %49 : vector<1x2x1x128xf32> to vector<2x128xf32>
      %51 = vector.broadcast %12 : vector<1x128xf32> to vector<2x128xf32>
      %52 = arith.mulf %47, %51 : vector<2x128xf32>
      %53 = arith.addf %50, %52 : vector<2x128xf32>
      %54 = math.tanh %53 : vector<2x128xf32>
      %55 = arith.index_cast %10 : i32 to index
      %c0_21 = arith.constant 0 : index
      %c6 = arith.constant 6 : index
      %c0_22 = arith.constant 0 : index
      %56 = vector.load %arg10[%55, %c0_21, %c6, %c0_22] : memref<2x2x8x128xf32, #tpu.memory_space<vmem>>, vector<1x2x1x128xf32>
      %57 = vector.shape_cast %56 : vector<1x2x1x128xf32> to vector<2x128xf32>
      %58 = vector.broadcast %12 : vector<1x128xf32> to vector<2x128xf32>
      %59 = arith.mulf %54, %58 : vector<2x128xf32>
      %60 = arith.addf %57, %59 : vector<2x128xf32>
      %61 = math.tanh %60 : vector<2x128xf32>
      %62 = arith.index_cast %10 : i32 to index
      %c0_23 = arith.constant 0 : index
      %c7 = arith.constant 7 : index
      %c0_24 = arith.constant 0 : index
      %63 = vector.load %arg10[%62, %c0_23, %c7, %c0_24] : memref<2x2x8x128xf32, #tpu.memory_space<vmem>>, vector<1x2x1x128xf32>
      %64 = vector.shape_cast %63 : vector<1x2x1x128xf32> to vector<2x128xf32>
      %65 = vector.broadcast %12 : vector<1x128xf32> to vector<2x128xf32>
      %66 = arith.mulf %61, %65 : vector<2x128xf32>
      %67 = arith.addf %64, %66 : vector<2x128xf32>
      %68 = math.tanh %67 : vector<2x128xf32>
      %c0_25 = arith.constant 0 : index
      %c0_26 = arith.constant 0 : index
      %69 = vector.load %arg9[%c0_25, %c0_26] : memref<2x128xf32, #tpu.memory_space<vmem>>, vector<2x128xf32>
      tpu.vector_store %arg9[%c0_25, %c0_26], %68 {strides = array<i32>} : memref<2x128xf32, #tpu.memory_space<vmem>>, vector<2x128xf32>,
      %c1_i32_27 = arith.constant 1 : i32
      %70 = arith.cmpi eq, %arg1, %c1_i32_27 : i32
      %71 = arith.extui %70 : i1 to i32
      %c0_i32_28 = arith.constant 0 : i32
      %72 = arith.cmpi ne, %71, %c0_i32_28 : i32
      scf.if %72 {
        %c0_29 = arith.constant 0 : index
        %c0_30 = arith.constant 0 : index
        %73 = vector.load %arg6[%c0_29, %c0_30] : memref<128x128xf32, #tpu.memory_space<vmem>>, vector<128x128xf32>
        %cst = arith.constant dense<0.000000e+00> : vector<2x128xf32>
        %74 = tpu.matmul %68, %73, %cst {dimension_numbers = #tpu.dot_dimension_numbers<[1], [0], [0], [1], [0, 0, 1, 1], [], []>} : vector<2x128xf32>, vector<128x128xf32>, vector<2x128xf32> -> vector<2x128xf32>
        %c0_31 = arith.constant 0 : index
        %c0_32 = arith.constant 0 : index
        %75 = vector.load %arg7[%c0_31, %c0_32] : memref<1x128xf32, #tpu.memory_space<vmem>>, vector<1x128xf32>
        %76 = vector.broadcast %75 : vector<1x128xf32> to vector<2x128xf32>
        %77 = arith.addf %74, %76 : vector<2x128xf32>
        %c0_33 = arith.constant 0 : index
        %c0_34 = arith.constant 0 : index
        %78 = vector.load %arg8[%c0_33, %c0_34] : memref<2x128xf32, #tpu.memory_space<vmem>>, vector<2x128xf32>
        tpu.vector_store %arg8[%c0_33, %c0_34], %77 {strides = array<i32>} : memref<2x128xf32, #tpu.memory_space<vmem>>, vector<2x128xf32>,
      } else {
      }
    } else {
    }
    %c1_i32 = arith.constant 1 : i32
    %7 = arith.cmpi slt, %arg1, %c1_i32 : i32
    %8 = arith.extui %7 : i1 to i32
    %c0_i32_3 = arith.constant 0 : i32
    %9 = arith.cmpi ne, %8, %c0_i32_3 : i32
    scf.if %9 {
      %c0 = arith.constant 0 : index
      %c0_4 = arith.constant 0 : index
      %c0_5 = arith.constant 0 : index
      %10 = vector.load %arg2[%c0, %c0_4, %c0_5] : memref<2x8x273xf32, #tpu.memory_space<vmem>>, vector<2x8x273xf32>
      %11 = vector.shape_cast %10 : vector<2x8x273xf32> to vector<16x273xf32>
      %c0_6 = arith.constant 0 : index
      %c0_7 = arith.constant 0 : index
      %12 = vector.load %arg3[%c0_6, %c0_7] : memref<273x128xf32, #tpu.memory_space<vmem>>, vector<273x128xf32>
      %cst = arith.constant dense<0.000000e+00> : vector<16x128xf32>
      %13 = tpu.matmul %11, %12, %cst {dimension_numbers = #tpu.dot_dimension_numbers<[1], [0], [0], [1], [0, 0, 1, 1], [], []>} : vector<16x273xf32>, vector<273x128xf32>, vector<16x128xf32> -> vector<16x128xf32>
      %c0_8 = arith.constant 0 : index
      %c0_9 = arith.constant 0 : index
      %14 = vector.load %arg5[%c0_8, %c0_9] : memref<1x128xf32, #tpu.memory_space<vmem>>, vector<1x128xf32>
      %15 = vector.broadcast %14 : vector<1x128xf32> to vector<16x128xf32>
      %16 = arith.addf %13, %15 : vector<16x128xf32>
      %17 = vector.shape_cast %16 : vector<16x128xf32> to vector<2x8x128xf32>
      %18 = arith.index_cast %0 : i32 to index
      %c0_10 = arith.constant 0 : index
      %c0_11 = arith.constant 0 : index
      %c0_12 = arith.constant 0 : index
      %19 = vector.load %arg10[%18, %c0_10, %c0_11, %c0_12] : memref<2x2x8x128xf32, #tpu.memory_space<vmem>>, vector<1x2x8x128xf32>
      %20 = vector.shape_cast %19 : vector<1x2x8x128xf32> to vector<2x8x128xf32>
      %21 = vector.shape_cast %17 : vector<2x8x128xf32> to vector<1x2x8x128xf32>
      tpu.vector_store %arg10[%18, %c0_10, %c0_11, %c0_12], %21 {strides = array<i32>} : memref<2x2x8x128xf32, #tpu.memory_space<vmem>>, vector<1x2x8x128xf32>,
    } else {
    }
    return
  }
  func.func @transform_0(%arg0: i32, %arg1: i32) -> (i32, i32, i32) {
    %c0_i32 = arith.constant 0 : i32
    %0 = arith.minsi %arg1, %c0_i32 : i32
    %c0_i32_0 = arith.constant 0 : i32
    %c0_i32_1 = arith.constant 0 : i32
    return %arg0, %0, %c0_i32_0 : i32, i32, i32
  }
  func.func @transform_1(%arg0: i32, %arg1: i32) -> (i32, i32) {
    %c0_i32 = arith.constant 0 : i32
    %c0_i32_0 = arith.constant 0 : i32
    %c0_i32_1 = arith.constant 0 : i32
    return %c0_i32, %c0_i32_0 : i32, i32
  }
  func.func @transform_2(%arg0: i32, %arg1: i32) -> (i32, i32) {
    %c0_i32 = arith.constant 0 : i32
    %c0_i32_0 = arith.constant 0 : i32
    %c0_i32_1 = arith.constant 0 : i32
    return %c0_i32, %c0_i32_0 : i32, i32
  }
  func.func @transform_3(%arg0: i32, %arg1: i32) -> (i32, i32) {
    %c0_i32 = arith.constant 0 : i32
    %c0_i32_0 = arith.constant 0 : i32
    %c0_i32_1 = arith.constant 0 : i32
    return %c0_i32, %c0_i32_0 : i32, i32
  }
  func.func @transform_4(%arg0: i32, %arg1: i32) -> (i32, i32) {
    %c0_i32 = arith.constant 0 : i32
    %c0_i32_0 = arith.constant 0 : i32
    %c0_i32_1 = arith.constant 0 : i32
    return %c0_i32, %c0_i32_0 : i32, i32
  }
  func.func @transform_5(%arg0: i32, %arg1: i32) -> (i32, i32) {
    %c0_i32 = arith.constant 0 : i32
    %c0_i32_0 = arith.constant 0 : i32
    %c0_i32_1 = arith.constant 0 : i32
    return %c0_i32, %c0_i32_0 : i32, i32
  }
  func.func @transform_6(%arg0: i32, %arg1: i32) -> (i32, i32) {
    %c0_i32 = arith.constant 0 : i32
    %c0_i32_0 = arith.constant 0 : i32
    return %arg0, %c0_i32 : i32, i32
  }
}

</mosaic_0001>

<llo_original>
// kernel: tpu_custom_call.1
$region0: #{tpu_custom_call.1}
  #allocation0 [shape = 'u32[]', space=smem, size = 0x4, offset = 0x4, fixed_abs, tag = 'smem constant byte address 0x4 - core index']
  #allocation1 [shape = 'u32[72,128]{1,0:T(1,128)}', space=vmem, size = 0x9000, scoped, tag = 'internal scratch']
  #allocation2 [shape = 'f32[2,128]{1,0:T(2,128)}', space=vmem, size = 0x400, scoped, tag = 'scratch operand']
  #allocation3 [shape = 'f32[2,2,8,128]{3,2,1,0:T(8,128)}', space=vmem, size = 0x4000, scoped, tag = 'scratch operand']
  %s0 = inlined_call_operand.hbm [shape: f32[2,8,273], index: 0, kind: input, shape index: {}]
  %s1 = inlined_call_operand.hbm [shape: f32[273,128], index: 1, kind: input, shape index: {}]
  %s2 = inlined_call_operand.hbm [shape: f32[128,128], index: 2, kind: input, shape index: {}]
  %s3 = inlined_call_operand.vmem [shape: f32[1,128], index: 3, kind: input, shape index: {}]
  %s4 = inlined_call_operand.hbm [shape: f32[128,128], index: 4, kind: input, shape index: {}]
  %s5 = inlined_call_operand.vmem [shape: f32[1,128], index: 5, kind: input, shape index: {}]
  %s6 = inlined_call_operand.hbm [shape: f32[2,128], index: 6, kind: output, shape index: {}]
  %s7 = sld [smem:[#allocation0]]
  $region89: #{tpu_custom_call.1} parent=0
    _
  %s9 = ssub.s32 1, %s7
  %s10 = scalar_select 0, %s9, %s7
  $region1: #{tpu_custom_call.1} parent=0
    #allocation4 [shape = 'u8[49152]{0}', space=vmem, size = 0xc000, scoped, tag = 'input window, operand 0']
    #allocation5 [shape = 's32[2]{0}', space=sflag, size = 0x8, scoped, tag = 'scoped memory for tpu_custom_call.1']
    #allocation6 [shape = 's32[2]{0}', space=sflag, size = 0x8, scoped, tag = 'scoped memory for tpu_custom_call.1']
    #allocation7 [shape = 'u8[143360]{0}', space=vmem, size = 0x23000, scoped, tag = 'input window, operand 1, single buffered']
    #allocation8 [shape = 's32[1]{0}', space=sflag, size = 0x4, scoped, tag = 'scoped memory for tpu_custom_call.1']
    #allocation9 [shape = 'u8[65536]{0}', space=vmem, size = 0x10000, scoped, tag = 'input window, operand 2, single buffered']
    #allocation10 [shape = 'u8[65536]{0}', space=vmem, size = 0x10000, scoped, tag = 'input window, operand 4, single buffered']
    #allocation11 [shape = 's32[1]{0}', space=sflag, size = 0x4, scoped, tag = 'scoped memory for tpu_custom_call.1']
    #allocation12 [shape = 'u8[1024]{0}', space=vmem, size = 0x400, scoped, tag = 'output window, operand 0, single buffered']
    %11 = vsyncpa [#allocation5], 0
    %s12 = scalar_lea.sflag [#allocation5], 1
    %13 = vsyncpa %s12, 0
    %14 = vsyncpa [#allocation8], 0
    %15 = vsyncpa [#allocation11], 0
    %16 = vsyncpa [#allocation6], 0
    loop: start=0, step=1, limit=4
    $region2: #{tpu_custom_call.1} parent=1 // loop_pre_header
      _
    $region3: #{tpu_custom_call.1} parent=1 // loop_header
      %s18 = sphi 0, %s22
      %p19 = scmp.ge.s32.totalorder %s18, 4
      %s25 = sphi 0, %s37
      %s26 = sphi 0, %s33
      %s27 = sphi 0, %s25
      %s28 = sphi 0, %s26
      %s29 = sphi 0, %s27
      %s30 = sphi 0, %s28
      %s46 = sphi 0, %s48
      %s49 = sphi 0, %s46
      %s50 = sphi 0, %s49
      %s66 = sphi 0, %s50
      %s70 = sphi 0, %s70
      %s72 = sphi 0, %s70
      %s73 = sphi 0, %s72
      %s87 = sphi 0, %s73
      %s91 = sphi 0, %s91
      %s93 = sphi 0, %s91
      %s94 = sphi 0, %s93
      %s108 = sphi 0, %s94
      %s112 = sphi 0, %s112
      %s114 = sphi 0, %s112
      %s115 = sphi 0, %s114
      %s129 = sphi 0, %s115
      %s133 = sphi 0, %s133
      %s135 = sphi 0, %s133
      %s136 = sphi 0, %s135
      %s150 = sphi 0, %s136
      %s154 = sphi 0, %s154
      %s156 = sphi 0, %s154
      %s157 = sphi 0, %s156
      %s171 = sphi 0, %s157
      %s177 = sphi 0, %s179
      %s180 = sphi 0, %s177
      %s181 = sphi 0, %s180
      %s197 = sphi 0, %s181
    $region4: #{tpu_custom_call.1} parent=1 // loop_header_branch
      %21 = sbr.rel (%p19) target = $region8
    $region5: #{tpu_custom_call.1} parent=1 // loop_body
      %s23 = ssub.s32 %s18, 1
      %s24 = ssub.s32 %s18, 2
      %s31 = sadd.s32 1, %s26
      %p32 = scmp.ge.s32.totalorder %s31, 2
      %s33 = scalar_select %p32, 0, %s31
      %s34 = sadd.s32 1, %s25
      %s35 = scalar_select %p32, %s34, %s25
      %p36 = scmp.ge.s32.totalorder %s35, 1
      %s37 = scalar_select %p36, 0, %s35
      %p38 = scmp.lt.s32.totalorder %s26, 0
      %s39 = scalar_select %p38, %s26, 0
      %p40 = scmp.lt.s32.totalorder %s33, 0
      %s41 = scalar_select %p40, %s33, 0
      %s42 = ssub.s32 %s25, %s37
      %s43 = ssub.s32 %s39, %s41
      %s44 = sor.u32 %s42, %s43
      %p45 = scmp.eq.s32.totalorder %s44, 0
      %s47 = sadd.s32 %s46, 1
      %s48 = scalar_select %p45, %s46, %s47
      %p51 = pneg %p45
      %p52 = scmp.eq.s32.totalorder %s18, 1
      %p53 = por %p51, %p52
      %p54 = scmp.ne.s32.totalorder %s46, %s49
      %p55 = scmp.eq.s32.totalorder %s18, 0
      %p56 = por %p54, %p55
      %p57 = scmp.ne.s32.totalorder %s46, %s49
      %p58 = scmp.eq.s32.totalorder %s23, 1
      %p59 = por %p57, %p58
      %p60 = scmp.ne.s32.totalorder %s49, %s50
      %p61 = scmp.eq.s32.totalorder %s23, 0
      %p62 = por %p60, %p61
      %p63 = scmp.ne.s32.totalorder %s49, %s50
      %p64 = scmp.eq.s32.totalorder %s24, 1
      %p65 = por %p63, %p64
      %p67 = scmp.ne.s32.totalorder %s50, %s66
      %p68 = scmp.eq.s32.totalorder %s24, 0
      %p69 = por %p67, %p68
      %s71 = sadd.s32 %s70, 1
      %p74 = scmp.eq.s32.totalorder %s18, 1
      %p75 = scmp.ne.s32.totalorder %s70, %s72
      %p76 = scmp.eq.s32.totalorder %s18, 0
      %p77 = por %p75, %p76
      %p78 = scmp.ne.s32.totalorder %s70, %s72
      %p79 = scmp.eq.s32.totalorder %s23, 1
      %p80 = por %p78, %p79
      %p81 = scmp.ne.s32.totalorder %s72, %s73
      %p82 = scmp.eq.s32.totalorder %s23, 0
      %p83 = por %p81, %p82
      %p84 = scmp.ne.s32.totalorder %s72, %s73
      %p85 = scmp.eq.s32.totalorder %s24, 1
      %p86 = por %p84, %p85
      %p88 = scmp.ne.s32.totalorder %s73, %s87
      %p89 = scmp.eq.s32.totalorder %s24, 0
      %p90 = por %p88, %p89
      %s92 = sadd.s32 %s91, 1
      %p95 = scmp.eq.s32.totalorder %s18, 1
      %p96 = scmp.ne.s32.totalorder %s91, %s93
      %p97 = scmp.eq.s32.totalorder %s18, 0
      %p98 = por %p96, %p97
      %p99 = scmp.ne.s32.totalorder %s91, %s93
      %p100 = scmp.eq.s32.totalorder %s23, 1
      %p101 = por %p99, %p100
      %p102 = scmp.ne.s32.totalorder %s93, %s94
      %p103 = scmp.eq.s32.totalorder %s23, 0
      %p104 = por %p102, %p103
      %p105 = scmp.ne.s32.totalorder %s93, %s94
      %p106 = scmp.eq.s32.totalorder %s24, 1
      %p107 = por %p105, %p106
      %p109 = scmp.ne.s32.totalorder %s94, %s108
      %p110 = scmp.eq.s32.totalorder %s24, 0
      %p111 = por %p109, %p110
      %s113 = sadd.s32 %s112, 1
      %p116 = scmp.eq.s32.totalorder %s18, 1
      %p117 = scmp.ne.s32.totalorder %s112, %s114
      %p118 = scmp.eq.s32.totalorder %s18, 0
      %p119 = por %p117, %p118
      %p120 = scmp.ne.s32.totalorder %s112, %s114
      %p121 = scmp.eq.s32.totalorder %s23, 1
      %p122 = por %p120, %p121
      %p123 = scmp.ne.s32.totalorder %s114, %s115
      %p124 = scmp.eq.s32.totalorder %s23, 0
      %p125 = por %p123, %p124
      %p126 = scmp.ne.s32.totalorder %s114, %s115
      %p127 = scmp.eq.s32.totalorder %s24, 1
      %p128 = por %p126, %p127
      %p130 = scmp.ne.s32.totalorder %s115, %s129
      %p131 = scmp.eq.s32.totalorder %s24, 0
      %p132 = por %p130, %p131
      %s134 = sadd.s32 %s133, 1
      %p137 = scmp.eq.s32.totalorder %s18, 1
      %p138 = scmp.ne.s32.totalorder %s133, %s135
      %p139 = scmp.eq.s32.totalorder %s18, 0
      %p140 = por %p138, %p139
      %p141 = scmp.ne.s32.totalorder %s133, %s135
      %p142 = scmp.eq.s32.totalorder %s23, 1
      %p143 = por %p141, %p142
      %p144 = scmp.ne.s32.totalorder %s135, %s136
      %p145 = scmp.eq.s32.totalorder %s23, 0
      %p146 = por %p144, %p145
      %p147 = scmp.ne.s32.totalorder %s135, %s136
      %p148 = scmp.eq.s32.totalorder %s24, 1
      %p149 = por %p147, %p148
      %p151 = scmp.ne.s32.totalorder %s136, %s150
      %p152 = scmp.eq.s32.totalorder %s24, 0
      %p153 = por %p151, %p152
      %s155 = sadd.s32 %s154, 1
      %p158 = scmp.eq.s32.totalorder %s18, 1
      %p159 = scmp.ne.s32.totalorder %s154, %s156
      %p160 = scmp.eq.s32.totalorder %s18, 0
      %p161 = por %p159, %p160
      %p162 = scmp.ne.s32.totalorder %s154, %s156
      %p163 = scmp.eq.s32.totalorder %s23, 1
      %p164 = por %p162, %p163
      %p165 = scmp.ne.s32.totalorder %s156, %s157
      %p166 = scmp.eq.s32.totalorder %s23, 0
      %p167 = por %p165, %p166
      %p168 = scmp.ne.s32.totalorder %s156, %s157
      %p169 = scmp.eq.s32.totalorder %s24, 1
      %p170 = por %p168, %p169
      %p172 = scmp.ne.s32.totalorder %s157, %s171
      %p173 = scmp.eq.s32.totalorder %s24, 0
      %p174 = por %p172, %p173
      %s175 = ssub.s32 %s25, %s37
      %p176 = scmp.eq.s32.totalorder %s175, 0
      %s178 = sadd.s32 %s177, 1
      %s179 = scalar_select %p176, %s177, %s178
      %p182 = pneg %p176
      %p183 = scmp.eq.s32.totalorder %s18, 1
      %p184 = por %p182, %p183
      %p185 = scmp.ne.s32.totalorder %s177, %s180
      %p186 = scmp.eq.s32.totalorder %s18, 0
      %p187 = por %p185, %p186
      %p188 = scmp.ne.s32.totalorder %s177, %s180
      %p189 = scmp.eq.s32.totalorder %s23, 1
      %p190 = por %p188, %p189
      %p191 = scmp.ne.s32.totalorder %s180, %s181
      %p192 = scmp.eq.s32.totalorder %s23, 0
      %p193 = por %p191, %p192
      %p194 = scmp.ne.s32.totalorder %s180, %s181
      %p195 = scmp.eq.s32.totalorder %s24, 1
      %p196 = por %p194, %p195
      %p198 = scmp.ne.s32.totalorder %s181, %s197
      %p199 = scmp.eq.s32.totalorder %s24, 0
      %p200 = por %p198, %p199
      %p201 = scmp.le.s32.totalorder 1, %s18
      %p202 = scmp.lt.s32.totalorder %s18, 3
      %p203 = pnand %p201, %p202
      %p204 = pneg %p203
      // Predicated region
      $region9: #{tpu_custom_call.1} parent=5 // pred_check
        _
      $region10: #{tpu_custom_call.1} parent=5 // pred_check_branch
        %206 = sbr.rel (%p203) target = $region12
      $region11: #{tpu_custom_call.1} parent=5 // pred_region
        %s207 = ssub.s32 %s18, 1
        // Predicated region
        $region13: #{tpu_custom_call.1} parent=11 // pred_check
          %p208 = pneg %p83
        $region14: #{tpu_custom_call.1} parent=11 // pred_check_branch
          %210 = sbr.rel (%p208) target = $region16
        $region15: #{tpu_custom_call.1} parent=11 // pred_region
          %212 = vsyncadd [#allocation8], 0
          %s213 = sshll.u32 %s1, 4
          %s214 = int_to_ptr.hbm [resolvable:$true] %s213
          %s215 = sshll.u32 [#allocation7], 4
          %s216 = int_to_ptr.vmem [resolvable:$true] %s215
          %221 = dma.hbm_to_vmem [thread:$0]  %s214, 4480, %s216, [#allocation8], 128, 128, 8
        $region16: #{tpu_custom_call.1} parent=11 // pred_fallthru
          _
        // Predicated region
        $region17: #{tpu_custom_call.1} parent=11 // pred_check
          %p222 = pneg %p104
        $region18: #{tpu_custom_call.1} parent=11 // pred_check_branch
          %224 = sbr.rel (%p222) target = $region20
        $region19: #{tpu_custom_call.1} parent=11 // pred_region
          %226 = vsyncadd [#allocation8], 0
          %s227 = sshll.u32 %s2, 4
          %s228 = int_to_ptr.hbm [resolvable:$true] %s227
          %s229 = sshll.u32 [#allocation9], 4
          %s230 = int_to_ptr.vmem [resolvable:$true] %s229
          %235 = dma.hbm_to_vmem [thread:$0]  %s228, 2048, %s230, [#allocation8], 128, 128, 8
        $region20: #{tpu_custom_call.1} parent=11 // pred_fallthru
          _
        // Predicated region
        $region21: #{tpu_custom_call.1} parent=11 // pred_check
          %p236 = pneg %p125
        $region22: #{tpu_custom_call.1} parent=11 // pred_check_branch
          %238 = sbr.rel (%p236) target = $region24
        $region23: #{tpu_custom_call.1} parent=11 // pred_region
          _
        $region24: #{tpu_custom_call.1} parent=11 // pred_fallthru
          _
        // Predicated region
        $region25: #{tpu_custom_call.1} parent=11 // pred_check
          %p239 = pneg %p146
        $region26: #{tpu_custom_call.1} parent=11 // pred_check_branch
          %241 = sbr.rel (%p239) target = $region28
        $region27: #{tpu_custom_call.1} parent=11 // pred_region
          %243 = vsyncadd [#allocation11], 0
          %s244 = sshll.u32 %s4, 4
          %s245 = int_to_ptr.hbm [resolvable:$true] %s244
          %s246 = sshll.u32 [#allocation10], 4
          %s247 = int_to_ptr.vmem [resolvable:$true] %s246
          %252 = dma.hbm_to_vmem [thread:$0]  %s245, 2048, %s247, [#allocation11], 128, 128, 8
        $region28: #{tpu_custom_call.1} parent=11 // pred_fallthru
          _
        // Predicated region
        $region29: #{tpu_custom_call.1} parent=11 // pred_check
          %p253 = pneg %p167
        $region30: #{tpu_custom_call.1} parent=11 // pred_check_branch
          %255 = sbr.rel (%p253) target = $region32
        $region31: #{tpu_custom_call.1} parent=11 // pred_region
          _
        $region32: #{tpu_custom_call.1} parent=11 // pred_fallthru
          _
      $region12: #{tpu_custom_call.1} parent=5 // pred_fallthru
        _
      %p256 = scmp.lt.s32.totalorder %s18, 2
      // Predicated region
      $region33: #{tpu_custom_call.1} parent=5 // pred_check
        %p257 = pneg %p256
      $region34: #{tpu_custom_call.1} parent=5 // pred_check_branch
        %259 = sbr.rel (%p257) target = $region36
      $region35: #{tpu_custom_call.1} parent=5 // pred_region
        // Predicated region
        $region37: #{tpu_custom_call.1} parent=35 // pred_check
          %p260 = pneg %p56
        $region38: #{tpu_custom_call.1} parent=35 // pred_check_branch
          %262 = sbr.rel (%p260) target = $region40
        $region39: #{tpu_custom_call.1} parent=35 // pred_region
          %s263 = sand.u32 %s46, 1
          %s264 = scalar_lea.sflag [#allocation5], %s263
          %s265 = sand.u32 %s46, 1
          %s266 = smul.addr %s265, 48
          %s267 = scalar_lea.vmem [#allocation4], %s266
          %p268 = scmp.lt.s32.totalorder %s26, 0
          %s269 = scalar_select %p268, %s26, 0
          %s270 = smul.u32 2, %s25
          %272 = vsyncadd %s264, 0
          %s273 = smul.addr %s269, 3
          %s274 = smul.addr %s270, 3
          %s275 = sadd.s32 %s273, %s274
          %s276 = smul.addr %s275, 8
          %s277 = scalar_lea.hbm %s0, %s276
          %s278 = sshll.u32 %s277, 4
          %s279 = int_to_ptr.hbm [resolvable:$true] %s278
          %s280 = sshll.u32 %s267, 4
          %s281 = int_to_ptr.vmem [resolvable:$true] %s280
          %286 = dma.hbm_to_vmem [thread:$0]  %s279, 768, %s281, %s264, 384, 384, 24
        $region40: #{tpu_custom_call.1} parent=35 // pred_fallthru
          _
      $region36: #{tpu_custom_call.1} parent=5 // pred_fallthru
        _
      %p287 = scmp.le.s32.totalorder 1, %s18
      %p288 = scmp.lt.s32.totalorder %s18, 3
      %p289 = pnand %p287, %p288
      %p290 = pneg %p289
      // Predicated region
      $region41: #{tpu_custom_call.1} parent=5 // pred_check
        _
      $region42: #{tpu_custom_call.1} parent=5 // pred_check_branch
        %292 = sbr.rel (%p289) target = $region44
      $region43: #{tpu_custom_call.1} parent=5 // pred_region
        %s293 = ssub.s32 %s18, 1
        %s294 = sand.u32 %s49, 1
        %s295 = scalar_lea.sflag [#allocation5], %s294
        %s296 = sand.u32 %s49, 1
        %s297 = smul.addr %s296, 48
        %s298 = scalar_lea.vmem [#allocation4], %s297
        // Predicated region
        $region45: #{tpu_custom_call.1} parent=43 // pred_check
          %p299 = pneg %p62
        $region46: #{tpu_custom_call.1} parent=43 // pred_check_branch
          %301 = sbr.rel (%p299) target = $region48
        $region47: #{tpu_custom_call.1} parent=43 // pred_region
          %303 = dma.done %s295, 768
        $region48: #{tpu_custom_call.1} parent=43 // pred_fallthru
          _
        // Predicated region
        $region49: #{tpu_custom_call.1} parent=43 // pred_check
          %p304 = pneg %p83
        $region50: #{tpu_custom_call.1} parent=43 // pred_check_branch
          %306 = sbr.rel (%p304) target = $region52
        $region51: #{tpu_custom_call.1} parent=43 // pred_region
          %308 = dma.done [#allocation8], 4480
        $region52: #{tpu_custom_call.1} parent=43 // pred_fallthru
          _
        // Predicated region
        $region53: #{tpu_custom_call.1} parent=43 // pred_check
          %p309 = pneg %p104
        $region54: #{tpu_custom_call.1} parent=43 // pred_check_branch
          %311 = sbr.rel (%p309) target = $region56
        $region55: #{tpu_custom_call.1} parent=43 // pred_region
          %313 = dma.done [#allocation8], 2048
        $region56: #{tpu_custom_call.1} parent=43 // pred_fallthru
          _
        // Predicated region
        $region57: #{tpu_custom_call.1} parent=43 // pred_check
          %p314 = pneg %p146
        $region58: #{tpu_custom_call.1} parent=43 // pred_check_branch
          %316 = sbr.rel (%p314) target = $region60
        $region59: #{tpu_custom_call.1} parent=43 // pred_region
          %318 = dma.done [#allocation11], 2048
        $region60: #{tpu_custom_call.1} parent=43 // pred_fallthru
          _
        %s319 = sand.u32 %s49, 1
        %s320 = scalar_lea.sflag [#allocation5], %s319
        %s321 = sand.u32 %s49, 1
        %s322 = smul.addr %s321, 48
        %s323 = scalar_lea.vmem [#allocation4], %s322
        %p324 = pneg %p62
        %p325 = pneg %p59
        %p326 = pneg %p83
        %p327 = pneg %p80
        %p328 = pneg %p104
        %p329 = pneg %p101
        %p330 = pneg %p125
        %p331 = pneg %p122
        %p332 = pneg %p146
        %p333 = pneg %p143
        %p334 = pneg %p167
        %p335 = pneg %p164
        %p336 = pneg %p193
        %p337 = pneg %p190
        %p338 = scmp.lt.s32.totalorder %s28, 0
        %s339 = scalar_select %p338, %s28, 0
        %s340 = smul.u32 2, %s27
        %p341 = scmp.lt.s32.totalorder %s28, 0
        %s342 = ssub.s32 0, %s28
        %s343 = scalar_select %p341, %s342, %s28
        %s344 = sand.u32 %s343, 1
        %s345 = ssub.s32 0, %s344
        %s346 = scalar_select %p341, %s345, %s344
        %p347 = scmp.eq.s32.totalorder %s28, 0
        // Predicated region
        $region61: #{tpu_custom_call.1} parent=43 // pred_check
          %p348 = pneg %p347
        $region62: #{tpu_custom_call.1} parent=43 // pred_check_branch
          %350 = sbr.rel (%p348) target = $region64
        $region63: #{tpu_custom_call.1} parent=43 // pred_region
          %351 = vst [vmem:[#allocation2] sm:$0x3] 0.0
        $region64: #{tpu_custom_call.1} parent=43 // pred_fallthru
          _
        %p352 = scmp.gt.s32.totalorder %s28, 0
        // Predicated region
        $region65: #{tpu_custom_call.1} parent=43 // pred_check
          %p353 = pneg %p352
        $region66: #{tpu_custom_call.1} parent=43 // pred_check_branch
          %355 = sbr.rel (%p353) target = $region68
        $region67: #{tpu_custom_call.1} parent=43 // pred_region
          %s356 = ssub.s32 1, %s346
          %v357 = vld [vmem:[#allocation2] sm:$0x3]
          %v358 = vld [vmem:[#allocation9] sm:$0x1]
          %s359 = smul.u32 %s356, 16
          %s360 = scalar_lea.vmem [#allocation3], %s359
          %v361 = vld [vmem:[%s360] sm:$0x1]
          %v362 = vld [vmem:[%s360 + $0x8] sm:$0x1]
          %v363 = vperm.slane %v358, 0
          %v364 = vmul.f32 %v357, %v363
          %v366 = vrot.slane %v364, 1
          %v369 = vadd.f32 %v361, %v364
          %v370 = vadd.f32 %v362, %v366
          %v371 = vtanh.pop %v369
          %v372 = vtanh.pop %v370
          %v373 = vld [vmem:[%s360 + $0x1] sm:$0x1]
          %v374 = vld [vmem:[%s360 + $0x9] sm:$0x1]
          %v375 = vmul.f32 %v371, %v363
          %v376 = vmul.f32 %v372, %v363
          %v377 = vadd.f32 %v373, %v375
          %v378 = vadd.f32 %v374, %v376
          %v379 = vtanh.pop %v377
          %v380 = vtanh.pop %v378
          %v381 = vld [vmem:[%s360 + $0x2] sm:$0x1]
          %v382 = vld [vmem:[%s360 + $0xa] sm:$0x1]
          %v383 = vmul.f32 %v379, %v363
          %v384 = vmul.f32 %v380, %v363
          %v385 = vadd.f32 %v381, %v383
          %v386 = vadd.f32 %v382, %v384
          %v387 = vtanh.pop %v385
          %v388 = vtanh.pop %v386
          %v389 = vld [vmem:[%s360 + $0x3] sm:$0x1]
          %v390 = vld [vmem:[%s360 + $0xb] sm:$0x1]
          %v391 = vmul.f32 %v387, %v363
          %v392 = vmul.f32 %v388, %v363
          %v393 = vadd.f32 %v389, %v391
          %v394 = vadd.f32 %v390, %v392
          %v395 = vtanh.pop %v393
          %v396 = vtanh.pop %v394
          %v397 = vld [vmem:[%s360 + $0x4] sm:$0x1]
          %v398 = vld [vmem:[%s360 + $0xc] sm:$0x1]
          %v399 = vmul.f32 %v395, %v363
          %v400 = vmul.f32 %v396, %v363
          %v401 = vadd.f32 %v397, %v399
          %v402 = vadd.f32 %v398, %v400
          %v403 = vtanh.pop %v401
          %v404 = vtanh.pop %v402
          %v405 = vld [vmem:[%s360 + $0x5] sm:$0x1]
          %v406 = vld [vmem:[%s360 + $0xd] sm:$0x1]
          %v407 = vmul.f32 %v403, %v363
          %v408 = vmul.f32 %v404, %v363
          %v409 = vadd.f32 %v405, %v407
          %v410 = vadd.f32 %v406, %v408
          %v411 = vtanh.pop %v409
          %v412 = vtanh.pop %v410
          %v413 = vld [vmem:[%s360 + $0x6] sm:$0x1]
          %v414 = vld [vmem:[%s360 + $0xe] sm:$0x1]
          %v415 = vmul.f32 %v411, %v363
          %v416 = vmul.f32 %v412, %v363
          %v417 = vadd.f32 %v413, %v415
          %v418 = vadd.f32 %v414, %v416
          %v419 = vtanh.pop %v417
          %v420 = vtanh.pop %v418
          %v421 = vld [vmem:[%s360 + $0x7] sm:$0x1]
          %v422 = vld [vmem:[%s360 + $0xf] sm:$0x1]
          %v423 = vmul.f32 %v419, %v363
          %v424 = vmul.f32 %v420, %v363
          %v425 = vadd.f32 %v421, %v423
          %v426 = vadd.f32 %v422, %v424
          %v427 = vtanh.pop %v425
          %v428 = vtanh.pop %v426
          %v431 = vrot.slane %v428, 7
          %vm432 = vcmask 1041409
          %v433 = vsel %vm432, %v431, %v427
          %435 = vst [vmem:[#allocation2] sm:$0x3] %v433
          %p436 = scmp.eq.s32.totalorder %s28, 1
          // Predicated region
          $region69: #{tpu_custom_call.1} parent=67 // pred_check
            %p437 = pneg %p436
          $region70: #{tpu_custom_call.1} parent=67 // pred_check_branch
            %439 = sbr.rel (%p437) target = $region72
          $region71: #{tpu_custom_call.1} parent=67 // pred_region
            %v440 = vld [vmem:[#allocation10] sm:$0xff]
            %v441 = vld [vmem:[#allocation10 + $0x8] sm:$0xff]
            %v442 = vld [vmem:[#allocation10 + $0x10] sm:$0xff]
            %v443 = vld [vmem:[#allocation10 + $0x18] sm:$0xff]
            %v444 = vld [vmem:[#allocation10 + $0x20] sm:$0xff]
            %v445 = vld [vmem:[#allocation10 + $0x28] sm:$0xff]
            %v446 = vld [vmem:[#allocation10 + $0x30] sm:$0xff]
            %v447 = vld [vmem:[#allocation10 + $0x38] sm:$0xff]
            %v448 = vld [vmem:[#allocation10 + $0x40] sm:$0xff]
            %v449 = vld [vmem:[#allocation10 + $0x48] sm:$0xff]
            %v450 = vld [vmem:[#allocation10 + $0x50] sm:$0xff]
            %v451 = vld [vmem:[#allocation10 + $0x58] sm:$0xff]
            %v452 = vld [vmem:[#allocation10 + $0x60] sm:$0xff]
            %v453 = vld [vmem:[#allocation10 + $0x68] sm:$0xff]
            %v454 = vld [vmem:[#allocation10 + $0x70] sm:$0xff]
            %v455 = vld [vmem:[#allocation10 + $0x78] sm:$0xff]
            %v456 = vld [vmem:[%s5] sm:$0x1]
            %v458 = vperm.slane %v456, 0
            %460 = vmatpush.msra.mxu0 %v455
            %461 = vmatpush.msra.mxu0 %v454
            %462 = vmatpush.msra.mxu0 %v453
            %463 = vmatpush.msra.mxu0 %v452
            %464 = vmatpush.msra.mxu0 %v451
            %465 = vmatpush.msra.mxu0 %v450
            %466 = vmatpush.msra.mxu0 %v449
            %467 = vmatpush.msra.mxu0 %v448
            %468 = vmatpush.msra.mxu0 %v447
            %469 = vmatpush.msra.mxu0 %v446
            %470 = vmatpush.msra.mxu0 %v445
            %471 = vmatpush.msra.mxu0 %v444
            %472 = vmatpush.msra.mxu0 %v443
            %473 = vmatpush.msra.mxu0 %v442
            %474 = vmatpush.msra.mxu0 %v441
            %475 = vmatpush.msra.mxu0 %v440
            %476 = vmatmul.f32.gmra.mxu0 %v433
            %v477 = vpop.f32.mrf.mxu0
            %v478 = vadd.f32 %v458, %v477
            %479 = vdwg.mxu0
            %480 = vst [vmem:[#allocation12] sm:$0x3] %v478
          $region72: #{tpu_custom_call.1} parent=67 // pred_fallthru
            _
        $region68: #{tpu_custom_call.1} parent=43 // pred_fallthru
          _
        %p481 = scmp.lt.s32.totalorder %s28, 1
        // Predicated region
        $region73: #{tpu_custom_call.1} parent=43 // pred_check
          %p482 = pneg %p481
        $region74: #{tpu_custom_call.1} parent=43 // pred_check_branch
          %484 = sbr.rel (%p482) target = $region76
        $region75: #{tpu_custom_call.1} parent=43 // pred_region
          %v485 = vld [vmem:[%s298] sm:$0xff]
          %v486 = vld [vmem:[%s298 + $0x8] sm:$0xff]
          %v487 = vld [vmem:[%s298 + $0x10] sm:$0xff]
          %v488 = vld [vmem:[%s298 + $0x18] sm:$0xff]
          %v489 = vld [vmem:[%s298 + $0x20] sm:$0xff]
          %v490 = vld [vmem:[%s298 + $0x28] sm:$0xff]
          %v491 = vld [vmem:[#allocation7] sm:$0xff]
          %v492 = vld [vmem:[#allocation7 + $0x8] sm:$0xff]
          %v493 = vld [vmem:[#allocation7 + $0x10] sm:$0xff]
          %v494 = vld [vmem:[#allocation7 + $0x18] sm:$0xff]
          %v495 = vld [vmem:[#allocation7 + $0x20] sm:$0xff]
          %v496 = vld [vmem:[#allocation7 + $0x28] sm:$0xff]
          %v497 = vld [vmem:[#allocation7 + $0x30] sm:$0xff]
          %v498 = vld [vmem:[#allocation7 + $0x38] sm:$0xff]
          %v499 = vld [vmem:[#allocation7 + $0x40] sm:$0xff]
          %v500 = vld [vmem:[#allocation7 + $0x48] sm:$0xff]
          %v501 = vld [vmem:[#allocation7 + $0x50] sm:$0xff]
          %v502 = vld [vmem:[#allocation7 + $0x58] sm:$0xff]
          %v503 = vld [vmem:[#allocation7 + $0x60] sm:$0xff]
          %v504 = vld [vmem:[#allocation7 + $0x68] sm:$0xff]
          %v505 = vld [vmem:[#allocation7 + $0x70] sm:$0xff]
          %v506 = vld [vmem:[#allocation7 + $0x78] sm:$0xff]
          %v507 = vld [vmem:[#allocation7 + $0x80] sm:$0xff]
          %v508 = vld [vmem:[#allocation7 + $0x88] sm:$0xff]
          %v509 = vld [vmem:[#allocation7 + $0x90] sm:$0xff]
          %v510 = vld [vmem:[#allocation7 + $0x98] sm:$0xff]
          %v511 = vld [vmem:[#allocation7 + $0xa0] sm:$0xff]
          %v512 = vld [vmem:[#allocation7 + $0xa8] sm:$0xff]
          %v513 = vld [vmem:[#allocation7 + $0xb0] sm:$0xff]
          %v514 = vld [vmem:[#allocation7 + $0xb8] sm:$0xff]
          %v515 = vld [vmem:[#allocation7 + $0xc0] sm:$0xff]
          %v516 = vld [vmem:[#allocation7 + $0xc8] sm:$0xff]
          %v517 = vld [vmem:[#allocation7 + $0xd0] sm:$0xff]
          %v518 = vld [vmem:[#allocation7 + $0xd8] sm:$0xff]
          %v519 = vld [vmem:[#allocation7 + $0xe0] sm:$0xff]
          %v520 = vld [vmem:[#allocation7 + $0xe8] sm:$0xff]
          %v521 = vld [vmem:[#allocation7 + $0xf0] sm:$0xff]
          %v522 = vld [vmem:[#allocation7 + $0xf8] sm:$0xff]
          %v523 = vld [vmem:[#allocation7 + $0x100] sm:$0xff]
          %v524 = vld [vmem:[#allocation7 + $0x108] sm:$0xff]
          %v525 = vld [vmem:[#allocation7 + $0x110] sm:$0x1]
          %v526 = vld [vmem:[%s3] sm:$0x1]
          %v528 = vperm.slane %v526, 0
          %vm530 = vcmask 138240
          %v532 = vsel %vm530, %v487, 0
          %v535 = vsel %vm530, %v490, 0
          %vm537 = vcmask 1040384
          %v539 = vsel %vm537, %v525, 0
          %541 = vmatpush.msra.mxu0 %v506
          %542 = vmatpush.msra.mxu0 %v505
          %543 = vmatpush.msra.mxu0 %v504
          %544 = vmatpush.msra.mxu0 %v503
          %545 = vmatpush.msra.mxu0 %v502
          %546 = vmatpush.msra.mxu0 %v501
          %547 = vmatpush.msra.mxu0 %v500
          %548 = vmatpush.msra.mxu0 %v499
          %549 = vmatpush.msra.mxu0 %v498
          %550 = vmatpush.msra.mxu0 %v497
          %551 = vmatpush.msra.mxu0 %v496
          %552 = vmatpush.msra.mxu0 %v495
          %553 = vmatpush.msra.mxu0 %v494
          %554 = vmatpush.msra.mxu0 %v493
          %555 = vmatpush.msra.mxu0 %v492
          %556 = vmatpush.msra.mxu0 %v491
          %557 = vmatmul.f32.gmra.mxu0 %v485
          %v558 = vpop.f32.mrf.mxu0
          %v559 = vadd.f32 %v528, %v558
          %560 = vmatmul.f32.gmra.mxu0 %v488
          %v561 = vpop.f32.mrf.mxu0
          %v562 = vadd.f32 %v528, %v561
          %563 = vdwg.mxu0
          %564 = vmatpush.msra.mxu0 %v522
          %565 = vmatpush.msra.mxu0 %v521
          %566 = vmatpush.msra.mxu0 %v520
          %567 = vmatpush.msra.mxu0 %v519
          %568 = vmatpush.msra.mxu0 %v518
          %569 = vmatpush.msra.mxu0 %v517
          %570 = vmatpush.msra.mxu0 %v516
          %571 = vmatpush.msra.mxu0 %v515
          %572 = vmatpush.msra.mxu0 %v514
          %573 = vmatpush.msra.mxu0 %v513
          %574 = vmatpush.msra.mxu0 %v512
          %575 = vmatpush.msra.mxu0 %v511
          %576 = vmatpush.msra.mxu0 %v510
          %577 = vmatpush.msra.mxu0 %v509
          %578 = vmatpush.msra.mxu0 %v508
          %579 = vmatpush.msra.mxu0 %v507
          %580 = vmatmul.f32.gmra.mxu0 %v486
          %v581 = vpop.f32.mrf.mxu0
          %v582 = vadd.f32 %v559, %v581
          %583 = vmatmul.f32.gmra.mxu0 %v489
          %v584 = vpop.f32.mrf.mxu0
          %v585 = vadd.f32 %v562, %v584
          %586 = vdwg.mxu0
          %587 = vmatpush.msra.mxu0 0.0
          %588 = vmatpush.msra.mxu0 0.0
          %589 = vmatpush.msra.mxu0 0.0
          %590 = vmatpush.msra.mxu0 0.0
          %591 = vmatpush.msra.mxu0 0.0
          %592 = vmatpush.msra.mxu0 0.0
          %593 = vmatpush.msra.mxu0 0.0
          %594 = vmatpush.msra.mxu0 0.0
          %595 = vmatpush.msra.mxu0 0.0
          %596 = vmatpush.msra.mxu0 0.0
          %597 = vmatpush.msra.mxu0 0.0
          %598 = vmatpush.msra.mxu0 0.0
          %599 = vmatpush.msra.mxu0 0.0
          %600 = vmatpush.msra.mxu0 %v539
          %601 = vmatpush.msra.mxu0 %v524
          %602 = vmatpush.msra.mxu0 %v523
          %603 = vmatmul.f32.gmra.mxu0 %v532
          %v604 = vpop.f32.mrf.mxu0
          %v605 = vadd.f32 %v582, %v604
          %606 = vmatmul.f32.gmra.mxu0 %v535
          %v607 = vpop.f32.mrf.mxu0
          %v608 = vadd.f32 %v585, %v607
          %609 = vdwg.mxu0
          %s610 = smul.u32 %s346, 16
          %s611 = scalar_lea.vmem [#allocation3], %s610
          %612 = vst [vmem:[%s611] sm:$0xff] %v605
          %613 = vst [vmem:[%s611 + $0x8] sm:$0xff] %v608
        $region76: #{tpu_custom_call.1} parent=43 // pred_fallthru
          _
        // Predicated region
        $region77: #{tpu_custom_call.1} parent=43 // pred_check
          %p614 = pneg %p190
        $region78: #{tpu_custom_call.1} parent=43 // pred_check_branch
          %616 = sbr.rel (%p614) target = $region80
        $region79: #{tpu_custom_call.1} parent=43 // pred_region
          %618 = vsyncadd [#allocation6], 0
          %s619 = smul.addr %s27, 2
          %s620 = scalar_lea.hbm %s6, %s619
          %s622 = sshll.u32 [#allocation12], 4
          %s623 = int_to_ptr.vmem [resolvable:$true] %s622
          %s624 = sshll.u32 %s620, 4
          %s625 = int_to_ptr.hbm [resolvable:$true] %s624
          %627 = dma.vmem_to_hbm [thread:$0]  %s623, 32, %s625, [#allocation6]
        $region80: #{tpu_custom_call.1} parent=43 // pred_fallthru
          _
        // Predicated region
        $region81: #{tpu_custom_call.1} parent=43 // pred_check
          %p628 = pneg %p190
        $region82: #{tpu_custom_call.1} parent=43 // pred_check_branch
          %630 = sbr.rel (%p628) target = $region84
        $region83: #{tpu_custom_call.1} parent=43 // pred_region
          %632 = dma.done [#allocation6], 32
        $region84: #{tpu_custom_call.1} parent=43 // pred_fallthru
          _
      $region44: #{tpu_custom_call.1} parent=5 // pred_fallthru
        _
      %p633 = scmp.le.s32.totalorder 2, %s18
      // Predicated region
      $region85: #{tpu_custom_call.1} parent=5 // pred_check
        %p634 = pneg %p633
      $region86: #{tpu_custom_call.1} parent=5 // pred_check_branch
        %636 = sbr.rel (%p634) target = $region88
      $region87: #{tpu_custom_call.1} parent=5 // pred_region
        %s637 = ssub.s32 %s18, 2
      $region88: #{tpu_custom_call.1} parent=5 // pred_fallthru
        _
    $region6: #{tpu_custom_call.1} parent=1 // loop_footer
      %s22 = sadd.s32 1, %s18
    $region7: #{tpu_custom_call.1} parent=1 // loop_footer_branch
      %17 = sbr.rel target = $region3
    $region8: #{tpu_custom_call.1} parent=1 // loop_exit
      _
    %638 = vsyncpa [#allocation5], 1
    %s639 = scalar_lea.sflag [#allocation5], 1
    %640 = vsyncpa %s639, 1
    %641 = vsyncpa [#allocation8], 1
    %642 = vsyncpa [#allocation11], 1
    %643 = vsyncpa [#allocation6], 1
    %s644 = scalar_lea.sflag [#allocation6], 1
    %645 = vsyncpa %s644, 1

</llo_original>
